<compile_context>
chip_gen: v6e
topology: v6e:2x2x1
jax: 0.10.0
libtpu: 0.0.40
codegen_flags: <defaults>
</compile_context>

<pallas_src>
import functools

import jax
import jax.numpy as jnp
from jax.experimental import pallas as pl
from jax.experimental.pallas import tpu as pltpu

OBS = 24          # flattened observation size
HID = 32          # recurrent hidden size / actor-critic hidden size
NACT = 5          # Discrete(action_space.n)

HP = 128          # hidden size padded to one full lane group
AP = 128          # action-logit lanes padded to one full lane group
NEG_BIG = -1e30   # "minus infinity" for padded logit lanes (finite -> no NaNs)

# concatenated-bias lane layout (every offset is a multiple of 128 lanes)
B_IH = 0 * HP      # GRU input-gate biases  [0, 384)
B_HH = 3 * HP      # GRU hidden-gate biases [384, 768)
B_FC1 = 6 * HP     # fused actor|critic fc1 [768, 896)
B_FC2V = 7 * HP    # fused actor-fc2|value  [896, 1152)
B_DIST = 9 * HP    # Categorical head       [1152, 1280)
BIAS_LANES = 10 * HP

# dead hidden lanes used for scalar packing (real hidden occupies [0, HID))
LANE_VALUE = HP - 4
LANE_LOGP = HP - 3
LANE_ENT = HP - 2
LANE_ACT = HP - 1
LANE_MASK = HP - 1   # input side: mask folded into lane 127 of the h slab


def _policy_act_kernel(x_ref, h_ref,
                       w_ih_ref, w_hh_ref,   # GRU gate weights (bf16), gates at 0/HP/2HP
                       w1_ref,               # fused actor-fc1|critic-fc1 (bf16) (HP, HP)
                       w2v_ref,              # fused actor-fc2|value head (bf16) (HP, 2HP)
                       wd_ref,               # Categorical head (bf16) (HP, AP)
                       bias_ref,             # all biases concatenated, f32 (1, BIAS_LANES)
                       out_ref):
    f32, bf16 = jnp.float32, jnp.bfloat16

    x = x_ref[...]                                   # (BN, OBS) f32
    h_raw = h_ref[...]                               # (BN, HP): hidden + mask@127
    mask = h_raw[:, LANE_MASK:LANE_MASK + 1]         # (BN, 1)
    h = h_raw * mask                                 # masked hidden (GRU rows >=HID are 0)

    b_ih = bias_ref[:, B_IH:B_IH + 3 * HP]
    b_hh = bias_ref[:, B_HH:B_HH + 3 * HP]
    b1 = bias_ref[:, B_FC1:B_FC1 + HP]
    b2v = bias_ref[:, B_FC2V:B_FC2V + 2 * HP]
    bd = bias_ref[:, B_DIST:B_DIST + AP]

    # ---- GRU cell (torch.nn.GRUCell semantics), gates at 128-lane offsets ---
    gi = jnp.dot(x.astype(bf16), w_ih_ref[...], preferred_element_type=f32) + b_ih
    gh = jnp.dot(h.astype(bf16), w_hh_ref[...], preferred_element_type=f32) + b_hh
    r = jax.nn.sigmoid(gi[:, 0:HP] + gh[:, 0:HP])
    z = jax.nn.sigmoid(gi[:, HP:2 * HP] + gh[:, HP:2 * HP])
    n = jnp.tanh(gi[:, 2 * HP:3 * HP] + r * gh[:, 2 * HP:3 * HP])
    h_new = (1.0 - z) * n + z * h                    # padded lanes [HID,124) stay 0

    # ---- fused actor-fc1 | critic-fc1: one (HP,HP) matmul, one tanh vreg ----
    hc = jnp.tanh(jnp.dot(h_new.astype(bf16), w1_ref[...],
                          preferred_element_type=f32) + b1)          # (BN, HP)

    # ---- fused actor-fc2 | value head: one (HP, 2*HP) matmul ----------------
    out2 = jnp.dot(hc.astype(bf16), w2v_ref[...],
                   preferred_element_type=f32) + b2v                 # (BN, 2*HP)
    actor_features = jnp.tanh(out2[:, 0:HP])
    value = out2[:, HP:HP + 1]                       # value head lands in lane HP

    # ---- Categorical head, padded logits carry a -1e30 bias -----------------
    logits = jnp.dot(actor_features.astype(bf16), wd_ref[...],
                     preferred_element_type=f32) + bd                # (BN, AP)
    mx = jnp.max(logits, axis=-1, keepdims=True)
    shifted = logits - mx
    lse = jnp.log(jnp.sum(jnp.exp(shifted), axis=-1, keepdims=True))
    log_probs = shifted - lse
    probs = jnp.exp(log_probs)                       # padded lanes exactly 0

    lane = jax.lax.broadcasted_iota(jnp.int32, logits.shape, 1)      # AP == HP
    # deterministic action = dist.mode() = argmax(logits), first index on ties
    is_max = logits == mx
    action = jnp.min(jnp.where(is_max, lane, AP), axis=-1, keepdims=True)
    logp = jnp.sum(jnp.where(lane == action, log_probs, 0.0),
                   axis=-1, keepdims=True)
    per_ent = -jnp.sum(probs * log_probs, axis=-1, keepdims=True)
    act_f = action.astype(f32)                       # small ints, exact in f32

    # ---- single lane-dense output slab: hidden + scalars in dead lanes ------
    scalars = jnp.where(lane == LANE_VALUE, value,
              jnp.where(lane == LANE_LOGP, logp,
              jnp.where(lane == LANE_ENT, per_ent, act_f)))
    out_ref[...] = jnp.where(lane < LANE_VALUE, h_new, scalars)


def _choose_block_n(n, cap):
    """Largest row tile <= cap (multiple of 8), aiming for >=2 grid steps."""
    half = -(-n // 2)
    return max(8, min(cap, -(-half // 8) * 8))


@functools.partial(jax.jit, static_argnames=("block_n",))
def _policy_act_impl(inputs, rnn_hxs, masks, kparams, *, block_n):
    N = inputs.shape[0]
    n_blocks = max(1, -(-N // block_n))
    n_pad = n_blocks * block_n

    # Pad batch to whole blocks; hidden padded to 128 lanes; mask in lane 127.
    x = jnp.zeros((n_pad, OBS), jnp.float32).at[:N].set(inputs)
    h = jnp.zeros((n_pad, HP), jnp.float32)
    h = h.at[:N, :HID].set(rnn_hxs)
    h = h.at[:N, LANE_MASK:LANE_MASK + 1].set(masks)

    def batch_spec(cols):
        return pl.BlockSpec((block_n, cols), lambda i: (i, 0))

    def resident(p):          # same block every step -> weight stays in VMEM
        return pl.BlockSpec(p.shape, lambda i: (0, 0))

    out = pl.pallas_call(
        _policy_act_kernel,
        grid=(n_blocks,),
        out_shape=jax.ShapeDtypeStruct((n_pad, HP), jnp.float32),
        in_specs=[batch_spec(OBS), batch_spec(HP)] + [resident(p) for p in kparams],
        out_specs=pl.BlockSpec((block_n, HP), lambda i: (i, 0)),
        compiler_params=pltpu.CompilerParams(
            dimension_semantics=("parallel",),          # v7x: shard blocks over 2 TCs
            vmem_limit_bytes=48 * 1024 * 1024),         # safe on v5e/v6e/v7x
    )(x, h, *kparams)

    value = out[:N, LANE_VALUE:LANE_VALUE + 1]
    action_log_probs = out[:N, LANE_LOGP:LANE_LOGP + 1]
    per_ent = out[:N, LANE_ENT:LANE_ENT + 1]
    action = out[:N, LANE_ACT:LANE_ACT + 1].astype(jnp.int32)
    new_hxs = out[:N, :HID]
    dist_entropy = jnp.mean(per_ent)                    # mean over true batch only
    return value, action, action_log_probs, new_hxs, dist_entropy


def policy_act(inputs, rnn_hxs, masks, kparams, *, block_n=None, block_cap=512):
    """Deterministic Policy.act(): (value, action, log_probs, new_hxs, entropy)."""
    if block_n is None:
        block_n = _choose_block_n(inputs.shape[0], block_cap)
    return _policy_act_impl(inputs, rnn_hxs, masks, kparams, block_n=block_n)


# ----------------------- parameter construction -----------------------------

def init_params(key):
    """Logical (unpadded, f32) parameters, PyTorch-equivalent but pre-transposed."""
    ks = jax.random.split(key, 14)
    f = jnp.float32

    def w(k, shape, scale=0.1):
        return scale * jax.random.normal(k, shape, dtype=f)

    w_ih = w(ks[0], (OBS, 3 * HID))
    w_hh = w(ks[1], (HID, 3 * HID))
    b_ih = w(ks[2], (1, 3 * HID), 0.01)
    b_hh = w(ks[3], (1, 3 * HID), 0.01)
    afc1_w = w(ks[4], (HID, HID))
    afc1_b = w(ks[5], (1, HID), 0.01)
    afc2_w = w(ks[6], (HID, HID))
    afc2_b = w(ks[7], (1, HID), 0.01)
    cfc1_w = w(ks[8], (HID, HID))
    cfc1_b = w(ks[9], (1, HID), 0.01)
    clin_w = w(ks[10], (HID, 1))
    clin_b = w(ks[11], (1, 1), 0.01)
    dist_w = w(ks[12], (HID, NACT), 0.01)   # Categorical head uses gain=0.01
    dist_b = jnp.zeros((1, NACT), dtype=f)
    return (w_ih, w_hh, b_ih, b_hh,
            afc1_w, afc1_b, afc2_w, afc2_b,
            cfc1_w, cfc1_b, clin_w, clin_b,
            dist_w, dist_b)


def pack_params(params):
    """One-time layout transform: 128-lane padded bf16 weights + one f32 bias slab."""
    (w_ih, w_hh, b_ih, b_hh,
     afc1_w, afc1_b, afc2_w, afc2_b,
     cfc1_w, cfc1_b, clin_w, clin_b,
     dist_w, dist_b) = params
    f32, bf16 = jnp.float32, jnp.bfloat16

    def pad_gate_w(wmat, rows):   # (in, 3*HID) -> (rows, 3*HP), gates @ 0/HP/2HP
        out = jnp.zeros((rows, 3 * HP), f32)
        for g in range(3):
            out = out.at[:wmat.shape[0], g * HP:g * HP + HID].set(
                wmat[:, g * HID:(g + 1) * HID])
        return out.astype(bf16)

    def pad_gate_b(b):            # (1, 3*HID) -> (3*HP,) gate-aligned bias
        out = jnp.zeros((3 * HP,), f32)
        for g in range(3):
            out = out.at[g * HP:g * HP + HID].set(b[0, g * HID:(g + 1) * HID])
        return out

    w_ih_p = pad_gate_w(w_ih, OBS)
    w_hh_p = pad_gate_w(w_hh, HP)

    # fused fc1: actor -> cols [0,HID), critic -> cols [HID,2*HID) of one (HP,HP)
    w1_p = jnp.zeros((HP, HP), f32)
    w1_p = w1_p.at[:HID, 0:HID].set(afc1_w).at[:HID, HID:2 * HID].set(cfc1_w)
    w1_p = w1_p.astype(bf16)

    # fused fc2 | value: (HP, 2*HP).  actor-fc2 reads hc[:, :HID] -> out [0,HID);
    # value head reads hc[:, HID:2*HID] -> out lane HP.
    w2v_p = jnp.zeros((HP, 2 * HP), f32)
    w2v_p = w2v_p.at[:HID, 0:HID].set(afc2_w)
    w2v_p = w2v_p.at[HID:2 * HID, HP:HP + 1].set(clin_w)
    w2v_p = w2v_p.astype(bf16)

    wd_p = jnp.zeros((HP, AP), f32).at[:HID, :NACT].set(dist_w).astype(bf16)

    # all biases concatenated into one resident f32 lane vector
    bias = jnp.zeros((1, BIAS_LANES), f32)
    bias = bias.at[0, B_IH:B_IH + 3 * HP].set(pad_gate_b(b_ih))
    bias = bias.at[0, B_HH:B_HH + 3 * HP].set(pad_gate_b(b_hh))
    bias = bias.at[0, B_FC1:B_FC1 + HID].set(afc1_b[0])
    bias = bias.at[0, B_FC1 + HID:B_FC1 + 2 * HID].set(cfc1_b[0])
    bias = bias.at[0, B_FC2V:B_FC2V + HID].set(afc2_b[0])
    bias = bias.at[0, B_FC2V + HP:B_FC2V + HP + 1].set(clin_b[0])
    bd_full = jnp.full((AP,), NEG_BIG, f32).at[:NACT].set(dist_b[0])
    bias = bias.at[0, B_DIST:B_DIST + AP].set(bd_full)

    return (w_ih_p, w_hh_p, w1_p, w2v_p, wd_p, bias)


# ----------------------- pure-JAX f32 reference ------------------------------

def policy_act_ref(inputs, rnn_hxs, masks, params):
    (w_ih, w_hh, b_ih, b_hh, afc1_w, afc1_b, afc2_w, afc2_b,
     cfc1_w, cfc1_b, clin_w, clin_b, dist_w, dist_b) = params
    h = rnn_hxs * masks
    gi = inputs @ w_ih + b_ih
    gh = h @ w_hh + b_hh
    i_r, i_z, i_n = jnp.split(gi, 3, axis=1)
    h_r, h_z, h_n = jnp.split(gh, 3, axis=1)
    r = jax.nn.sigmoid(i_r + h_r)
    z = jax.nn.sigmoid(i_z + h_z)
    n = jnp.tanh(i_n + r * h_n)
    h_new = (1.0 - z) * n + z * h
    a1 = jnp.tanh(h_new @ afc1_w + afc1_b)
    c1 = jnp.tanh(h_new @ cfc1_w + cfc1_b)
    actor_features = jnp.tanh(a1 @ afc2_w + afc2_b)
    value = c1 @ clin_w + clin_b
    logits = actor_features @ dist_w + dist_b
    log_probs = jax.nn.log_softmax(logits, axis=-1)
    action = jnp.argmax(logits, axis=-1, keepdims=True)
    logp = jnp.take_along_axis(log_probs, action, axis=-1)
    ent = -jnp.sum(jnp.exp(log_probs) * log_probs, axis=-1, keepdims=True)
    return value, action, logp, h_new, jnp.mean(ent)


if __name__ == "__main__":
    key = jax.random.PRNGKey(0)
    k_par, k_data = jax.random.split(key)
    params = init_params(k_par)
    kparams = pack_params(params)

    for N in (4, 20):   # exercises single-block and multi-block (padded) paths
        k_in, k_hx, k_m = jax.random.split(jax.random.fold_in(k_data, N), 3)
        inputs = jax.random.normal(k_in, (N, OBS), dtype=jnp.float32)
        rnn_hxs = jax.random.normal(k_hx, (N, HID), dtype=jnp.float32)
        masks = (jax.random.uniform(k_m, (N, 1)) > 0.3).astype(jnp.float32)

        value, action, logp, new_hxs, ent = jax.block_until_ready(
            policy_act(inputs, rnn_hxs, masks, kparams))

        assert value.shape == (N, 1)
        assert action.shape == (N, 1) and action.dtype == jnp.int32
        assert logp.shape == (N, 1)
        assert new_hxs.shape == (N, HID)
        assert ent.shape == ()
        assert bool(jnp.all(jnp.isfinite(value)))
        assert bool(jnp.all(jnp.isfinite(logp)))
        assert bool(jnp.all(jnp.isfinite(new_hxs)))
        assert bool(jnp.isfinite(ent))
        assert bool(jnp.all((action >= 0) & (action < NACT)))

        # f32 reference check (bf16 MXU inputs -> loose tolerance; argmax may
        # flip on near-tied logits, so only the action *range* is asserted).
        rv, ra, rl, rh, re = policy_act_ref(inputs, rnn_hxs, masks, params)
        tol = 5e-2
        assert float(jnp.max(jnp.abs(value - rv))) < tol
        assert float(jnp.max(jnp.abs(new_hxs - rh))) < tol
        assert float(jnp.max(jnp.abs(logp - rl))) < tol
        assert float(jnp.abs(ent - re)) < tol

    print("KERNEL_OK")
</pallas_src>

<mosaic_0001>
module attributes {stable_mosaic.version = 11 : i64} {
  func.func @_policy_act_kernel(%arg0: i32, %arg1: memref<8x24xf32, #tpu.memory_space<vmem>>, %arg2: memref<8x128xf32, #tpu.memory_space<vmem>>, %arg3: memref<24x384xbf16, #tpu.memory_space<vmem>>, %arg4: memref<128x384xbf16, #tpu.memory_space<vmem>>, %arg5: memref<128x128xbf16, #tpu.memory_space<vmem>>, %arg6: memref<128x256xbf16, #tpu.memory_space<vmem>>, %arg7: memref<128x128xbf16, #tpu.memory_space<vmem>>, %arg8: memref<1x1280xf32, #tpu.memory_space<vmem>>, %arg9: memref<8x128xf32, #tpu.memory_space<vmem>>) attributes {dimension_semantics = [#tpu.dimension_semantics<parallel>], iteration_bounds = array<i64: 1>, scalar_prefetch = 0 : i64, scratch_operands = 0 : i64, tpu.core_type = #tpu.core_type<tc>, window_params = [{transform_indices = @transform_0, window_bounds = array<i64: 8, 24>}, {transform_indices = @transform_1, window_bounds = array<i64: 8, 128>}, {pipeline_mode = #tpu.pipeline_mode<synchronous>, transform_indices = @transform_2, window_bounds = array<i64: 24, 384>}, {pipeline_mode = #tpu.pipeline_mode<synchronous>, transform_indices = @transform_3, window_bounds = array<i64: 128, 384>}, {pipeline_mode = #tpu.pipeline_mode<synchronous>, transform_indices = @transform_4, window_bounds = array<i64: 128, 128>}, {pipeline_mode = #tpu.pipeline_mode<synchronous>, transform_indices = @transform_5, window_bounds = array<i64: 128, 256>}, {pipeline_mode = #tpu.pipeline_mode<synchronous>, transform_indices = @transform_6, window_bounds = array<i64: 128, 128>}, {pipeline_mode = #tpu.pipeline_mode<synchronous>, transform_indices = @transform_7, window_bounds = array<i64: 1, 1280>}, {transform_indices = @transform_8, window_bounds = array<i64: 8, 128>}]} {
    %c0 = arith.constant 0 : index
    %c0_0 = arith.constant 0 : index
    %0 = vector.load %arg1[%c0, %c0_0] : memref<8x24xf32, #tpu.memory_space<vmem>>, vector<8x24xf32>
    %c0_1 = arith.constant 0 : index
    %c0_2 = arith.constant 0 : index
    %1 = vector.load %arg2[%c0_1, %c0_2] : memref<8x128xf32, #tpu.memory_space<vmem>>, vector<8x128xf32>
    %2 = vector.extract_strided_slice %1 {offsets = [0, 127], sizes = [8, 1], strides = [1, 1]} : vector<8x128xf32> to vector<8x1xf32>
    %3 = vector.broadcast %2 : vector<8x1xf32> to vector<8x128xf32>
    %4 = arith.mulf %1, %3 : vector<8x128xf32>
    %c0_3 = arith.constant 0 : index
    %c0_4 = arith.constant 0 : index
    %5 = vector.load %arg8[%c0_3, %c0_4] : memref<1x1280xf32, #tpu.memory_space<vmem>>, vector<1x384xf32>
    %c0_5 = arith.constant 0 : index
    %c384 = arith.constant 384 : index
    %6 = vector.load %arg8[%c0_5, %c384] : memref<1x1280xf32, #tpu.memory_space<vmem>>, vector<1x384xf32>
    %c0_6 = arith.constant 0 : index
    %c768 = arith.constant 768 : index
    %7 = vector.load %arg8[%c0_6, %c768] : memref<1x1280xf32, #tpu.memory_space<vmem>>, vector<1x128xf32>
    %c0_7 = arith.constant 0 : index
    %c896 = arith.constant 896 : index
    %8 = vector.load %arg8[%c0_7, %c896] : memref<1x1280xf32, #tpu.memory_space<vmem>>, vector<1x256xf32>
    %c0_8 = arith.constant 0 : index
    %c1152 = arith.constant 1152 : index
    %9 = vector.load %arg8[%c0_8, %c1152] : memref<1x1280xf32, #tpu.memory_space<vmem>>, vector<1x128xf32>
    %10 = arith.truncf %0 : vector<8x24xf32> to vector<8x24xbf16>
    %c0_9 = arith.constant 0 : index
    %c0_10 = arith.constant 0 : index
    %11 = vector.load %arg3[%c0_9, %c0_10] : memref<24x384xbf16, #tpu.memory_space<vmem>>, vector<24x384xbf16>
    %cst = arith.constant dense<0.000000e+00> : vector<8x384xf32>
    %12 = tpu.matmul %10, %11, %cst {dimension_numbers = #tpu.dot_dimension_numbers<[1], [0], [0], [1], [0, 0, 1, 1], [], []>} : vector<8x24xbf16>, vector<24x384xbf16>, vector<8x384xf32> -> vector<8x384xf32>
    %13 = vector.broadcast %5 : vector<1x384xf32> to vector<8x384xf32>
    %14 = arith.addf %12, %13 : vector<8x384xf32>
    %15 = arith.truncf %4 : vector<8x128xf32> to vector<8x128xbf16>
    %c0_11 = arith.constant 0 : index
    %c0_12 = arith.constant 0 : index
    %16 = vector.load %arg4[%c0_11, %c0_12] : memref<128x384xbf16, #tpu.memory_space<vmem>>, vector<128x384xbf16>
    %cst_13 = arith.constant dense<0.000000e+00> : vector<8x384xf32>
    %17 = tpu.matmul %15, %16, %cst_13 {dimension_numbers = #tpu.dot_dimension_numbers<[1], [0], [0], [1], [0, 0, 1, 1], [], []>} : vector<8x128xbf16>, vector<128x384xbf16>, vector<8x384xf32> -> vector<8x384xf32>
    %18 = vector.broadcast %6 : vector<1x384xf32> to vector<8x384xf32>
    %19 = arith.addf %17, %18 : vector<8x384xf32>
    %20 = vector.extract_strided_slice %14 {offsets = [0, 0], sizes = [8, 128], strides = [1, 1]} : vector<8x384xf32> to vector<8x128xf32>
    %21 = vector.extract_strided_slice %19 {offsets = [0, 0], sizes = [8, 128], strides = [1, 1]} : vector<8x384xf32> to vector<8x128xf32>
    %22 = arith.addf %20, %21 : vector<8x128xf32>
    %23 = arith.negf %22 : vector<8x128xf32>
    %24 = math.exp %23 : vector<8x128xf32>
    %cst_14 = arith.constant 1.000000e+00 : f32
    %25 = vector.broadcast %cst_14 : f32 to vector<8x128xf32>
    %26 = arith.addf %25, %24 : vector<8x128xf32>
    %27 = arith.divf %25, %26 : vector<8x128xf32>
    %28 = vector.extract_strided_slice %14 {offsets = [0, 128], sizes = [8, 128], strides = [1, 1]} : vector<8x384xf32> to vector<8x128xf32>
    %29 = vector.extract_strided_slice %19 {offsets = [0, 128], sizes = [8, 128], strides = [1, 1]} : vector<8x384xf32> to vector<8x128xf32>
    %30 = arith.addf %28, %29 : vector<8x128xf32>
    %31 = arith.negf %30 : vector<8x128xf32>
    %32 = math.exp %31 : vector<8x128xf32>
    %cst_15 = arith.constant 1.000000e+00 : f32
    %33 = vector.broadcast %cst_15 : f32 to vector<8x128xf32>
    %34 = arith.addf %33, %32 : vector<8x128xf32>
    %35 = arith.divf %33, %34 : vector<8x128xf32>
    %36 = vector.extract_strided_slice %14 {offsets = [0, 256], sizes = [8, 128], strides = [1, 1]} : vector<8x384xf32> to vector<8x128xf32>
    %37 = vector.extract_strided_slice %19 {offsets = [0, 256], sizes = [8, 128], strides = [1, 1]} : vector<8x384xf32> to vector<8x128xf32>
    %38 = arith.mulf %27, %37 : vector<8x128xf32>
    %39 = arith.addf %36, %38 : vector<8x128xf32>
    %40 = math.tanh %39 : vector<8x128xf32>
    %cst_16 = arith.constant 1.000000e+00 : f32
    %41 = vector.broadcast %cst_16 : f32 to vector<8x128xf32>
    %42 = arith.subf %41, %35 : vector<8x128xf32>
    %43 = arith.mulf %42, %40 : vector<8x128xf32>
    %44 = arith.mulf %35, %4 : vector<8x128xf32>
    %45 = arith.addf %43, %44 : vector<8x128xf32>
    %46 = arith.truncf %45 : vector<8x128xf32> to vector<8x128xbf16>
    %c0_17 = arith.constant 0 : index
    %c0_18 = arith.constant 0 : index
    %47 = vector.load %arg5[%c0_17, %c0_18] : memref<128x128xbf16, #tpu.memory_space<vmem>>, vector<128x128xbf16>
    %cst_19 = arith.constant dense<0.000000e+00> : vector<8x128xf32>
    %48 = tpu.matmul %46, %47, %cst_19 {dimension_numbers = #tpu.dot_dimension_numbers<[1], [0], [0], [1], [0, 0, 1, 1], [], []>} : vector<8x128xbf16>, vector<128x128xbf16>, vector<8x128xf32> -> vector<8x128xf32>
    %49 = vector.broadcast %7 : vector<1x128xf32> to vector<8x128xf32>
    %50 = arith.addf %48, %49 : vector<8x128xf32>
    %51 = math.tanh %50 : vector<8x128xf32>
    %52 = arith.truncf %51 : vector<8x128xf32> to vector<8x128xbf16>
    %c0_20 = arith.constant 0 : index
    %c0_21 = arith.constant 0 : index
    %53 = vector.load %arg6[%c0_20, %c0_21] : memref<128x256xbf16, #tpu.memory_space<vmem>>, vector<128x256xbf16>
    %cst_22 = arith.constant dense<0.000000e+00> : vector<8x256xf32>
    %54 = tpu.matmul %52, %53, %cst_22 {dimension_numbers = #tpu.dot_dimension_numbers<[1], [0], [0], [1], [0, 0, 1, 1], [], []>} : vector<8x128xbf16>, vector<128x256xbf16>, vector<8x256xf32> -> vector<8x256xf32>
    %55 = vector.broadcast %8 : vector<1x256xf32> to vector<8x256xf32>
    %56 = arith.addf %54, %55 : vector<8x256xf32>
    %57 = vector.extract_strided_slice %56 {offsets = [0, 0], sizes = [8, 128], strides = [1, 1]} : vector<8x256xf32> to vector<8x128xf32>
    %58 = math.tanh %57 : vector<8x128xf32>
    %59 = vector.extract_strided_slice %56 {offsets = [0, 128], sizes = [8, 1], strides = [1, 1]} : vector<8x256xf32> to vector<8x1xf32>
    %60 = arith.truncf %58 : vector<8x128xf32> to vector<8x128xbf16>
    %c0_23 = arith.constant 0 : index
    %c0_24 = arith.constant 0 : index
    %61 = vector.load %arg7[%c0_23, %c0_24] : memref<128x128xbf16, #tpu.memory_space<vmem>>, vector<128x128xbf16>
    %cst_25 = arith.constant dense<0.000000e+00> : vector<8x128xf32>
    %62 = tpu.matmul %60, %61, %cst_25 {dimension_numbers = #tpu.dot_dimension_numbers<[1], [0], [0], [1], [0, 0, 1, 1], [], []>} : vector<8x128xbf16>, vector<128x128xbf16>, vector<8x128xf32> -> vector<8x128xf32>
    %63 = vector.broadcast %9 : vector<1x128xf32> to vector<8x128xf32>
    %64 = arith.addf %62, %63 : vector<8x128xf32>
    %cst_26 = arith.constant dense<0xFF800000> : vector<8xf32>
    %65 = vector.multi_reduction <maximumf>, %64, %cst_26 [1] : vector<8x128xf32> to vector<8xf32>
    %66 = vector.shape_cast %65 : vector<8xf32> to vector<8x1xf32>
    %67 = vector.broadcast %66 : vector<8x1xf32> to vector<8x128xf32>
    %68 = arith.subf %64, %67 : vector<8x128xf32>
    %69 = math.exp %68 : vector<8x128xf32>
    %cst_27 = arith.constant dense<0.000000e+00> : vector<8xf32>
    %70 = vector.multi_reduction <add>, %69, %cst_27 [1] : vector<8x128xf32> to vector<8xf32>
    %71 = vector.shape_cast %70 : vector<8xf32> to vector<8x1xf32>
    %72 = math.log %71 : vector<8x1xf32>
    %73 = vector.broadcast %72 : vector<8x1xf32> to vector<8x128xf32>
    %74 = arith.subf %68, %73 : vector<8x128xf32>
    %75 = math.exp %74 : vector<8x128xf32>
    %76 = tpu.iota {dimensions = array<i32: 1>} : vector<8x128xi32>
    %77 = vector.broadcast %66 : vector<8x1xf32> to vector<8x128xf32>
    %78 = arith.cmpf oeq, %64, %77 : vector<8x128xf32>
    %c128_i32 = arith.constant 128 : i32
    %79 = vector.broadcast %c128_i32 : i32 to vector<8x128xi32>
    %80 = arith.select %78, %76, %79 : vector<8x128xi1>, vector<8x128xi32>
    %cst_28 = arith.constant dense<2147483647> : vector<8xi32>
    %81 = vector.multi_reduction <minsi>, %80, %cst_28 [1] : vector<8x128xi32> to vector<8xi32>
    %82 = vector.shape_cast %81 : vector<8xi32> to vector<8x1xi32>
    %83 = vector.broadcast %82 : vector<8x1xi32> to vector<8x128xi32>
    %84 = arith.cmpi eq, %76, %83 : vector<8x128xi32>
    %cst_29 = arith.constant 0.000000e+00 : f32
    %85 = vector.broadcast %cst_29 : f32 to vector<8x128xf32>
    %86 = arith.select %84, %74, %85 : vector<8x128xi1>, vector<8x128xf32>
    %cst_30 = arith.constant dense<0.000000e+00> : vector<8xf32>
    %87 = vector.multi_reduction <add>, %86, %cst_30 [1] : vector<8x128xf32> to vector<8xf32>
    %88 = vector.shape_cast %87 : vector<8xf32> to vector<8x1xf32>
    %89 = arith.mulf %75, %74 : vector<8x128xf32>
    %cst_31 = arith.constant dense<0.000000e+00> : vector<8xf32>
    %90 = vector.multi_reduction <add>, %89, %cst_31 [1] : vector<8x128xf32> to vector<8xf32>
    %91 = vector.shape_cast %90 : vector<8xf32> to vector<8x1xf32>
    %cst_32 = arith.constant 0.000000e+00 : f32
    %92 = vector.broadcast %cst_32 : f32 to vector<8x1xf32>
    %93 = arith.subf %92, %91 : vector<8x1xf32>
    %94 = arith.sitofp %82 : vector<8x1xi32> to vector<8x1xf32>
    %c124_i32 = arith.constant 124 : i32
    %95 = vector.broadcast %c124_i32 : i32 to vector<8x128xi32>
    %96 = arith.cmpi eq, %76, %95 : vector<8x128xi32>
    %c125_i32 = arith.constant 125 : i32
    %97 = vector.broadcast %c125_i32 : i32 to vector<8x128xi32>
    %98 = arith.cmpi eq, %76, %97 : vector<8x128xi32>
    %c126_i32 = arith.constant 126 : i32
    %99 = vector.broadcast %c126_i32 : i32 to vector<8x128xi32>
    %100 = arith.cmpi eq, %76, %99 : vector<8x128xi32>
    %101 = vector.shape_cast %93 : vector<8x1xf32> to vector<8x1xf32>
    %102 = vector.broadcast %101 : vector<8x1xf32> to vector<8x128xf32>
    %103 = vector.shape_cast %94 : vector<8x1xf32> to vector<8x1xf32>
    %104 = vector.broadcast %103 : vector<8x1xf32> to vector<8x128xf32>
    %105 = arith.select %100, %102, %104 : vector<8x128xi1>, vector<8x128xf32>
    %106 = vector.shape_cast %88 : vector<8x1xf32> to vector<8x1xf32>
    %107 = vector.broadcast %106 : vector<8x1xf32> to vector<8x128xf32>
    %108 = arith.select %98, %107, %105 : vector<8x128xi1>, vector<8x128xf32>
    %109 = vector.shape_cast %59 : vector<8x1xf32> to vector<8x1xf32>
    %110 = vector.broadcast %109 : vector<8x1xf32> to vector<8x128xf32>
    %111 = arith.select %96, %110, %108 : vector<8x128xi1>, vector<8x128xf32>
    %c124_i32_33 = arith.constant 124 : i32
    %112 = vector.broadcast %c124_i32_33 : i32 to vector<8x128xi32>
    %113 = arith.cmpi slt, %76, %112 : vector<8x128xi32>
    %114 = arith.select %113, %45, %111 : vector<8x128xi1>, vector<8x128xf32>
    %c0_34 = arith.constant 0 : index
    %c0_35 = arith.constant 0 : index
    %115 = vector.load %arg9[%c0_34, %c0_35] : memref<8x128xf32, #tpu.memory_space<vmem>>, vector<8x128xf32>
    tpu.vector_store %arg9[%c0_34, %c0_35], %114 {strides = array<i32>} : memref<8x128xf32, #tpu.memory_space<vmem>>, vector<8x128xf32>,
    return
  }
  func.func @transform_0(%arg0: i32) -> (i32, i32) {
    %c0_i32 = arith.constant 0 : i32
    %c0_i32_0 = arith.constant 0 : i32
    return %arg0, %c0_i32 : i32, i32
  }
  func.func @transform_1(%arg0: i32) -> (i32, i32) {
    %c0_i32 = arith.constant 0 : i32
    %c0_i32_0 = arith.constant 0 : i32
    return %arg0, %c0_i32 : i32, i32
  }
  func.func @transform_2(%arg0: i32) -> (i32, i32) {
    %c0_i32 = arith.constant 0 : i32
    %c0_i32_0 = arith.constant 0 : i32
    %c0_i32_1 = arith.constant 0 : i32
    return %c0_i32, %c0_i32_0 : i32, i32
  }
  func.func @transform_3(%arg0: i32) -> (i32, i32) {
    %c0_i32 = arith.constant 0 : i32
    %c0_i32_0 = arith.constant 0 : i32
    %c0_i32_1 = arith.constant 0 : i32
    return %c0_i32, %c0_i32_0 : i32, i32
  }
  func.func @transform_4(%arg0: i32) -> (i32, i32) {
    %c0_i32 = arith.constant 0 : i32
    %c0_i32_0 = arith.constant 0 : i32
    %c0_i32_1 = arith.constant 0 : i32
    return %c0_i32, %c0_i32_0 : i32, i32
  }
  func.func @transform_5(%arg0: i32) -> (i32, i32) {
    %c0_i32 = arith.constant 0 : i32
    %c0_i32_0 = arith.constant 0 : i32
    %c0_i32_1 = arith.constant 0 : i32
    return %c0_i32, %c0_i32_0 : i32, i32
  }
  func.func @transform_6(%arg0: i32) -> (i32, i32) {
    %c0_i32 = arith.constant 0 : i32
    %c0_i32_0 = arith.constant 0 : i32
    %c0_i32_1 = arith.constant 0 : i32
    return %c0_i32, %c0_i32_0 : i32, i32
  }
  func.func @transform_7(%arg0: i32) -> (i32, i32) {
    %c0_i32 = arith.constant 0 : i32
    %c0_i32_0 = arith.constant 0 : i32
    %c0_i32_1 = arith.constant 0 : i32
    return %c0_i32, %c0_i32_0 : i32, i32
  }
  func.func @transform_8(%arg0: i32) -> (i32, i32) {
    %c0_i32 = arith.constant 0 : i32
    %c0_i32_0 = arith.constant 0 : i32
    return %arg0, %c0_i32 : i32, i32
  }
}

</mosaic_0001>

<llo_original>
// kernel: _policy_act_impl.1
$region0: #{_policy_act_impl.1}
  #allocation0 [shape = 'u32[]', space=smem, size = 0x4, offset = 0x4, fixed_abs, tag = 'smem constant byte address 0x4 - core index']
  #allocation1 [shape = 'u32[144,128]{1,0:T(1,128)}', space=vmem, size = 0x12000, scoped, tag = 'internal scratch']
  %s0 = inlined_call_operand.vmem [shape: f32[8,24], index: 0, kind: input, shape index: {}]
  %s1 = inlined_call_operand.vmem [shape: f32[8,128], index: 1, kind: input, shape index: {}]
  %s2 = inlined_call_operand.hbm [shape: bf16[24,384], index: 2, kind: input, shape index: {}]
  %s3 = inlined_call_operand.hbm [shape: bf16[128,384], index: 3, kind: input, shape index: {}]
  %s4 = inlined_call_operand.vmem [shape: bf16[128,128], index: 4, kind: input, shape index: {}]
  %s5 = inlined_call_operand.hbm [shape: bf16[128,256], index: 5, kind: input, shape index: {}]
  %s6 = inlined_call_operand.hbm [shape: bf16[128,128], index: 6, kind: input, shape index: {}]
  %s7 = inlined_call_operand.vmem [shape: f32[1,1280], index: 7, kind: input, shape index: {}]
  %s8 = inlined_call_operand.vmem [shape: f32[8,128], index: 8, kind: output, shape index: {}]
  %s9 = sld [smem:[#allocation0]]
  $region58: #{_policy_act_impl.1} parent=0
    _
  %s11 = ssub.s32 1, %s9
  %s12 = scalar_select 0, %s11, %s9
  $region1: #{_policy_act_impl.1} parent=0
    #allocation2 [shape = 'u8[18432]{0}', space=vmem, size = 0x4800, scoped, tag = 'input window, operand 2, single buffered']
    #allocation3 [shape = 's32[1]{0}', space=sflag, size = 0x4, scoped, tag = 'scoped memory for _policy_act_impl.1']
    #allocation4 [shape = 'u8[98304]{0}', space=vmem, size = 0x18000, scoped, tag = 'input window, operand 3, single buffered']
    #allocation5 [shape = 's32[1]{0}', space=sflag, size = 0x4, scoped, tag = 'scoped memory for _policy_act_impl.1']
    #allocation6 [shape = 'u8[65536]{0}', space=vmem, size = 0x10000, scoped, tag = 'input window, operand 5, single buffered']
    #allocation7 [shape = 'u8[32768]{0}', space=vmem, size = 0x8000, scoped, tag = 'input window, operand 6, single buffered']
    #allocation8 [shape = 's32[1]{0}', space=sflag, size = 0x4, scoped, tag = 'scoped memory for _policy_act_impl.1']
    %13 = vsyncpa [#allocation3], 0
    %14 = vsyncpa [#allocation5], 0
    %15 = vsyncpa [#allocation8], 0
    // Predicated region
    $region2: #{_policy_act_impl.1} parent=1 // pred_check
      _
    $region3: #{_policy_act_impl.1} parent=1 // pred_check_branch
      %17 = sbr.rel (0) target = $region5
    $region4: #{_policy_act_impl.1} parent=1 // pred_region
      _
    $region5: #{_policy_act_impl.1} parent=1 // pred_fallthru
      _
    // Predicated region
    $region6: #{_policy_act_impl.1} parent=1 // pred_check
      _
    $region7: #{_policy_act_impl.1} parent=1 // pred_check_branch
      %19 = sbr.rel (0) target = $region9
    $region8: #{_policy_act_impl.1} parent=1 // pred_region
      _
    $region9: #{_policy_act_impl.1} parent=1 // pred_fallthru
      _
    // Predicated region
    $region10: #{_policy_act_impl.1} parent=1 // pred_check
      _
    $region11: #{_policy_act_impl.1} parent=1 // pred_check_branch
      %21 = sbr.rel (0) target = $region13
    $region12: #{_policy_act_impl.1} parent=1 // pred_region
      %s23 = ssub.s32 576, 576
      %24 = vsyncadd [#allocation3], %s23
      %s25 = sshll.u32 [#allocation2], 4
      %s26 = int_to_ptr.vmem [resolvable:$true] %s25
      %31 = dma.hbm_to_vmem [thread:$0]  %s2, 576, %s26, [#allocation3], 192, 192, 12
    $region13: #{_policy_act_impl.1} parent=1 // pred_fallthru
      _
    // Predicated region
    $region14: #{_policy_act_impl.1} parent=1 // pred_check
      _
    $region15: #{_policy_act_impl.1} parent=1 // pred_check_branch
      %33 = sbr.rel (0) target = $region17
    $region16: #{_policy_act_impl.1} parent=1 // pred_region
      %s35 = ssub.s32 3072, 3072
      %36 = vsyncadd [#allocation5], %s35
      %s37 = sshll.u32 [#allocation4], 4
      %s38 = int_to_ptr.vmem [resolvable:$true] %s37
      %43 = dma.hbm_to_vmem [thread:$0]  %s3, 3072, %s38, [#allocation5], 192, 192, 12
    $region17: #{_policy_act_impl.1} parent=1 // pred_fallthru
      _
    // Predicated region
    $region18: #{_policy_act_impl.1} parent=1 // pred_check
      _
    $region19: #{_policy_act_impl.1} parent=1 // pred_check_branch
      %45 = sbr.rel (0) target = $region21
    $region20: #{_policy_act_impl.1} parent=1 // pred_region
      _
    $region21: #{_policy_act_impl.1} parent=1 // pred_fallthru
      _
    // Predicated region
    $region22: #{_policy_act_impl.1} parent=1 // pred_check
      _
    $region23: #{_policy_act_impl.1} parent=1 // pred_check_branch
      %47 = sbr.rel (0) target = $region25
    $region24: #{_policy_act_impl.1} parent=1 // pred_region
      %s49 = ssub.s32 2048, 2048
      %50 = vsyncadd [#allocation5], %s49
      %s51 = sshll.u32 [#allocation6], 4
      %s52 = int_to_ptr.vmem [resolvable:$true] %s51
      %57 = dma.hbm_to_vmem [thread:$0]  %s5, 2048, %s52, [#allocation5], 128, 128, 8
    $region25: #{_policy_act_impl.1} parent=1 // pred_fallthru
      _
    // Predicated region
    $region26: #{_policy_act_impl.1} parent=1 // pred_check
      _
    $region27: #{_policy_act_impl.1} parent=1 // pred_check_branch
      %59 = sbr.rel (0) target = $region29
    $region28: #{_policy_act_impl.1} parent=1 // pred_region
      %s61 = ssub.s32 1024, 1024
      %62 = vsyncadd [#allocation8], %s61
      %s63 = sshll.u32 [#allocation7], 4
      %s64 = int_to_ptr.vmem [resolvable:$true] %s63
      %69 = dma.hbm_to_vmem [thread:$0]  %s6, 1024, %s64, [#allocation8], 64, 64, 4
    $region29: #{_policy_act_impl.1} parent=1 // pred_fallthru
      _
    // Predicated region
    $region30: #{_policy_act_impl.1} parent=1 // pred_check
      _
    $region31: #{_policy_act_impl.1} parent=1 // pred_check_branch
      %71 = sbr.rel (0) target = $region33
    $region32: #{_policy_act_impl.1} parent=1 // pred_region
      _
    $region33: #{_policy_act_impl.1} parent=1 // pred_fallthru
      _
    // Predicated region
    $region34: #{_policy_act_impl.1} parent=1 // pred_check
      _
    $region35: #{_policy_act_impl.1} parent=1 // pred_check_branch
      %73 = sbr.rel (0) target = $region37
    $region36: #{_policy_act_impl.1} parent=1 // pred_region
      %74 = dma.done [#allocation3], 576
    $region37: #{_policy_act_impl.1} parent=1 // pred_fallthru
      _
    // Predicated region
    $region38: #{_policy_act_impl.1} parent=1 // pred_check
      _
    $region39: #{_policy_act_impl.1} parent=1 // pred_check_branch
      %76 = sbr.rel (0) target = $region41
    $region40: #{_policy_act_impl.1} parent=1 // pred_region
      %77 = dma.done [#allocation5], 3072
    $region41: #{_policy_act_impl.1} parent=1 // pred_fallthru
      _
    // Predicated region
    $region42: #{_policy_act_impl.1} parent=1 // pred_check
      _
    $region43: #{_policy_act_impl.1} parent=1 // pred_check_branch
      %79 = sbr.rel (0) target = $region45
    $region44: #{_policy_act_impl.1} parent=1 // pred_region
      %80 = dma.done [#allocation5], 2048
    $region45: #{_policy_act_impl.1} parent=1 // pred_fallthru
      _
    // Predicated region
    $region46: #{_policy_act_impl.1} parent=1 // pred_check
      _
    $region47: #{_policy_act_impl.1} parent=1 // pred_check_branch
      %82 = sbr.rel (0) target = $region49
    $region48: #{_policy_act_impl.1} parent=1 // pred_region
      %83 = dma.done [#allocation8], 1024
    $region49: #{_policy_act_impl.1} parent=1 // pred_fallthru
      _
    %v85 = vld [vmem:[%s0] sm:$0xff]
    %v86 = vld [vmem:[%s1] sm:$0xff]
    %88 = vset.pattern.permute.xlu0 127
    %89 = vperm.xlu0 %88, %v86
    %v90 = vpop.permute.xlu0 %89
    %v92 = vmul.f32 %v86, %v90
    %v93 = vld [vmem:[%s7] sm:$0x7]
    %v94 = vld [vmem:[%s7 + $0x3] sm:$0x7]
    %v95 = vld [vmem:[%s7 + $0x6] sm:$0x1]
    %v96 = vld [vmem:[%s7 + $0x7] sm:$0x3]
    %v97 = vld [vmem:[%s7 + $0x9] sm:$0x1]
    %v98 = vpack.c.bf16 %v85, %v85
    %v99 = vld [vmem:[#allocation2] sm:$0xff]
    %v100 = vld [vmem:[#allocation2 + $0x8] sm:$0xf]
    %v101 = vld [vmem:[#allocation2 + $0xc] sm:$0xff]
    %v102 = vld [vmem:[#allocation2 + $0x14] sm:$0xf]
    %v103 = vld [vmem:[#allocation2 + $0x18] sm:$0xff]
    %v104 = vld [vmem:[#allocation2 + $0x20] sm:$0xf]
    %v106 = vlaneseq
    %v107 = vshrl.u32 %v106, 7
    %v108 = vsub.s32 0, %v107
    %v109 = vrot.slane %v93, %v108
    %v110 = vlaneseq
    %v111 = vshrl.u32 %v110, 7
    %v112 = vsub.s32 1, %v111
    %v113 = vrot.slane %v93, %v112
    %v114 = vlaneseq
    %v115 = vshrl.u32 %v114, 7
    %v116 = vsub.s32 2, %v115
    %v117 = vrot.slane %v93, %v116
    %v127 = vunpack.c.l.b16 %v99
    %v128 = vunpack.c.h.b16 %v99
    %v129 = vunpack.c.l.b16 %v100
    %v130 = vunpack.c.l.b16 %v101
    %v131 = vunpack.c.h.b16 %v101
    %v132 = vunpack.c.l.b16 %v102
    %v133 = vunpack.c.l.b16 %v103
    %v134 = vunpack.c.h.b16 %v103
    %v135 = vunpack.c.l.b16 %v104
    %v136 = vpack.c.b16 %v130, %v127
    %v137 = vpack.c.b16 %v131, %v128
    %v138 = vpack.c.b16 %v132, %v129
    %v139 = vpack.c.b16 %v133, %v133
    %v140 = vpack.c.b16 %v134, %v134
    %v141 = vpack.c.b16 %v135, %v135
    %vm145 = vcmask 195584
    %v147 = vsel %vm145, %v98, 0
    %vm149 = vcmask 1043456
    %v151 = vsel %vm149, %v139, 0
    %v154 = vsel %vm149, %v140, 0
    %v157 = vsel %vm149, %v141, 0
    %159 = vmatprep.subr.bf16.mxu0 0
    %160 = vmatpush1.bf16.msra.mxu0 0
    %161 = vmatprep.subr.bf16.mxu0 0
    %162 = vmatpush1.bf16.msra.mxu0 0
    %163 = vmatprep.subr.bf16.mxu0 0
    %164 = vmatpush1.bf16.msra.mxu0 0
    %165 = vmatprep.subr.bf16.mxu0 0
    %166 = vmatpush1.bf16.msra.mxu0 0
    %167 = vmatprep.subr.bf16.mxu0 0
    %168 = vmatpush1.bf16.msra.mxu0 0
    %169 = vmatprep.subr.bf16.mxu0 0
    %170 = vmatpush1.bf16.msra.mxu0 0
    %171 = vmatprep.subr.bf16.mxu0 %v154
    %172 = vmatpush1.bf16.msra.mxu0 %v151
    %173 = vmatprep.subr.bf16.mxu0 %v137
    %174 = vmatpush1.bf16.msra.mxu0 %v136
    %175 = vmatprep.subr.bf16.mxu0 0
    %176 = vmatpush2.bf16.msra.mxu0 0
    %177 = vmatprep.subr.bf16.mxu0 0
    %178 = vmatpush2.bf16.msra.mxu0 0
    %179 = vmatprep.subr.bf16.mxu0 0
    %180 = vmatpush2.bf16.msra.mxu0 0
    %181 = vmatprep.subr.bf16.mxu0 0
    %182 = vmatpush2.bf16.msra.mxu0 0
    %183 = vmatprep.subr.bf16.mxu0 0
    %184 = vmatpush2.bf16.msra.mxu0 0
    %185 = vmatprep.subr.bf16.mxu0 0
    %186 = vmatpush2.bf16.msra.mxu0 0
    %187 = vmatprep.subr.bf16.mxu0 0
    %188 = vmatpush2.bf16.msra.mxu0 0
    %189 = vmatprep.subr.bf16.mxu0 0
    %190 = vmatpush2.bf16.msra.mxu0 0
    %191 = vmatprep.mubr.bf16.mxu0 0
    %192 = vmatmul.mubr.bf16.gmra.mxu0 %v147
    %v193 = vpop.f32.mrf.mxu0
    %v194 = vadd.f32 %v109, %v193
    %v195 = vpop.f32.mrf.mxu0
    %v196 = vadd.f32 %v113, %v195
    %v197 = vpop.f32.mrf.mxu0
    %v198 = vpop.f32.mrf.mxu0
    %199 = vdwg.mxu0
    %200 = vmatprep.subr.bf16.mxu0 0
    %201 = vmatpush1.bf16.msra.mxu0 0
    %202 = vmatprep.subr.bf16.mxu0 0
    %203 = vmatpush1.bf16.msra.mxu0 0
    %204 = vmatprep.subr.bf16.mxu0 0
    %205 = vmatpush1.bf16.msra.mxu0 0
    %206 = vmatprep.subr.bf16.mxu0 0
    %207 = vmatpush1.bf16.msra.mxu0 0
    %208 = vmatprep.subr.bf16.mxu0 0
    %209 = vmatpush1.bf16.msra.mxu0 0
    %210 = vmatprep.subr.bf16.mxu0 0
    %211 = vmatpush1.bf16.msra.mxu0 0
    %212 = vmatprep.subr.bf16.mxu0 0
    %213 = vmatpush1.bf16.msra.mxu0 %v157
    %214 = vmatprep.subr.bf16.mxu0 0
    %215 = vmatpush1.bf16.msra.mxu0 %v138
    %216 = vmatprep.subr.bf16.mxu0 0
    %217 = vmatpush2.bf16.msra.mxu0 0
    %218 = vmatprep.subr.bf16.mxu0 0
    %219 = vmatpush2.bf16.msra.mxu0 0
    %220 = vmatprep.subr.bf16.mxu0 0
    %221 = vmatpush2.bf16.msra.mxu0 0
    %222 = vmatprep.subr.bf16.mxu0 0
    %223 = vmatpush2.bf16.msra.mxu0 0
    %224 = vmatprep.subr.bf16.mxu0 0
    %225 = vmatpush2.bf16.msra.mxu0 0
    %226 = vmatprep.subr.bf16.mxu0 0
    %227 = vmatpush2.bf16.msra.mxu0 0
    %228 = vmatprep.subr.bf16.mxu0 0
    %229 = vmatpush2.bf16.msra.mxu0 0
    %230 = vmatprep.subr.bf16.mxu0 0
    %231 = vmatpush2.bf16.msra.mxu0 0
    %232 = vmatprep.mubr.bf16.mxu0 0
    %233 = vmatmul.mubr.bf16.gmra.mxu0 %v147
    %v234 = vpop.f32.mrf.mxu0
    %v235 = vadd.f32 %v117, %v234
    %v236 = vpop.f32.mrf.mxu0
    %v237 = vpop.f32.mrf.mxu0
    %v238 = vpop.f32.mrf.mxu0
    %239 = vdwg.mxu0
    %v240 = vpack.c.bf16 %v92, %v92
    %v241 = vld [vmem:[#allocation4] sm:$0xff]
    %v242 = vld [vmem:[#allocation4 + $0x8] sm:$0xf]
    %v243 = vld [vmem:[#allocation4 + $0xc] sm:$0xff]
    %v244 = vld [vmem:[#allocation4 + $0x14] sm:$0xf]
    %v245 = vld [vmem:[#allocation4 + $0x18] sm:$0xff]
    %v246 = vld [vmem:[#allocation4 + $0x20] sm:$0xf]
    %v247 = vld [vmem:[#allocation4 + $0x24] sm:$0xff]
    %v248 = vld [vmem:[#allocation4 + $0x2c] sm:$0xf]
    %v249 = vld [vmem:[#allocation4 + $0x30] sm:$0xff]
    %v250 = vld [vmem:[#allocation4 + $0x38] sm:$0xf]
    %v251 = vld [vmem:[#allocation4 + $0x3c] sm:$0xff]
    %v252 = vld [vmem:[#allocation4 + $0x44] sm:$0xf]
    %v253 = vld [vmem:[#allocation4 + $0x48] sm:$0xff]
    %v254 = vld [vmem:[#allocation4 + $0x50] sm:$0xf]
    %v255 = vld [vmem:[#allocation4 + $0x54] sm:$0xff]
    %v256 = vld [vmem:[#allocation4 + $0x5c] sm:$0xf]
    %v257 = vld [vmem:[#allocation4 + $0x60] sm:$0xff]
    %v258 = vld [vmem:[#allocation4 + $0x68] sm:$0xf]
    %v259 = vld [vmem:[#allocation4 + $0x6c] sm:$0xff]
    %v260 = vld [vmem:[#allocation4 + $0x74] sm:$0xf]
    %v261 = vld [vmem:[#allocation4 + $0x78] sm:$0xff]
    %v262 = vld [vmem:[#allocation4 + $0x80] sm:$0xf]
    %v263 = vld [vmem:[#allocation4 + $0x84] sm:$0xff]
    %v264 = vld [vmem:[#allocation4 + $0x8c] sm:$0xf]
    %v265 = vld [vmem:[#allocation4 + $0x90] sm:$0xff]
    %v266 = vld [vmem:[#allocation4 + $0x98] sm:$0xf]
    %v267 = vld [vmem:[#allocation4 + $0x9c] sm:$0xff]
    %v268 = vld [vmem:[#allocation4 + $0xa4] sm:$0xf]
    %v269 = vld [vmem:[#allocation4 + $0xa8] sm:$0xff]
    %v270 = vld [vmem:[#allocation4 + $0xb0] sm:$0xf]
    %v271 = vld [vmem:[#allocation4 + $0xb4] sm:$0xff]
    %v272 = vld [vmem:[#allocation4 + $0xbc] sm:$0xf]
    %v274 = vlaneseq
    %v275 = vshrl.u32 %v274, 7
    %v276 = vsub.s32 0, %v275
    %v277 = vrot.slane %v94, %v276
    %v278 = vlaneseq
    %v279 = vshrl.u32 %v278, 7
    %v280 = vsub.s32 1, %v279
    %v281 = vrot.slane %v94, %v280
    %v282 = vlaneseq
    %v283 = vshrl.u32 %v282, 7
    %v284 = vsub.s32 2, %v283
    %v285 = vrot.slane %v94, %v284
    %v321 = vunpack.c.l.b16 %v241
    %v322 = vunpack.c.h.b16 %v241
    %v323 = vunpack.c.l.b16 %v242
    %v324 = vunpack.c.l.b16 %v243
    %v325 = vunpack.c.h.b16 %v243
    %v326 = vunpack.c.l.b16 %v244
    %v327 = vunpack.c.l.b16 %v245
    %v328 = vunpack.c.h.b16 %v245
    %v329 = vunpack.c.l.b16 %v246
    %v330 = vunpack.c.l.b16 %v247
    %v331 = vunpack.c.h.b16 %v247
    %v332 = vunpack.c.l.b16 %v248
    %v333 = vunpack.c.l.b16 %v249
    %v334 = vunpack.c.h.b16 %v249
    %v335 = vunpack.c.l.b16 %v250
    %v336 = vunpack.c.l.b16 %v251
    %v337 = vunpack.c.h.b16 %v251
    %v338 = vunpack.c.l.b16 %v252
    %v339 = vunpack.c.l.b16 %v253
    %v340 = vunpack.c.h.b16 %v253
    %v341 = vunpack.c.l.b16 %v254
    %v342 = vunpack.c.l.b16 %v255
    %v343 = vunpack.c.h.b16 %v255
    %v344 = vunpack.c.l.b16 %v256
    %v345 = vunpack.c.l.b16 %v257
    %v346 = vunpack.c.h.b16 %v257
    %v347 = vunpack.c.l.b16 %v258
    %v348 = vunpack.c.l.b16 %v259
    %v349 = vunpack.c.h.b16 %v259
    %v350 = vunpack.c.l.b16 %v260
    %v351 = vunpack.c.l.b16 %v261
    %v352 = vunpack.c.h.b16 %v261
    %v353 = vunpack.c.l.b16 %v262
    %v354 = vunpack.c.l.b16 %v263
    %v355 = vunpack.c.h.b16 %v263
    %v356 = vunpack.c.l.b16 %v264
    %v357 = vunpack.c.l.b16 %v265
    %v358 = vunpack.c.h.b16 %v265
    %v359 = vunpack.c.l.b16 %v266
    %v360 = vunpack.c.l.b16 %v267
    %v361 = vunpack.c.h.b16 %v267
    %v362 = vunpack.c.l.b16 %v268
    %v363 = vunpack.c.l.b16 %v269
    %v364 = vunpack.c.h.b16 %v269
    %v365 = vunpack.c.l.b16 %v270
    %v366 = vunpack.c.l.b16 %v271
    %v367 = vunpack.c.h.b16 %v271
    %v368 = vunpack.c.l.b16 %v272
    %v369 = vpack.c.b16 %v324, %v321
    %v370 = vpack.c.b16 %v325, %v322
    %v371 = vpack.c.b16 %v326, %v323
    %v372 = vpack.c.b16 %v330, %v327
    %v373 = vpack.c.b16 %v331, %v328
    %v374 = vpack.c.b16 %v332, %v329
    %v375 = vpack.c.b16 %v336, %v333
    %v376 = vpack.c.b16 %v337, %v334
    %v377 = vpack.c.b16 %v338, %v335
    %v378 = vpack.c.b16 %v342, %v339
    %v379 = vpack.c.b16 %v343, %v340
    %v380 = vpack.c.b16 %v344, %v341
    %v381 = vpack.c.b16 %v348, %v345
    %v382 = vpack.c.b16 %v349, %v346
    %v383 = vpack.c.b16 %v350, %v347
    %v384 = vpack.c.b16 %v354, %v351
    %v385 = vpack.c.b16 %v355, %v352
    %v386 = vpack.c.b16 %v356, %v353
    %v387 = vpack.c.b16 %v360, %v357
    %v388 = vpack.c.b16 %v361, %v358
    %v389 = vpack.c.b16 %v362, %v359
    %v390 = vpack.c.b16 %v366, %v363
    %v391 = vpack.c.b16 %v367, %v364
    %v392 = vpack.c.b16 %v368, %v365
    %417 = vmatprep.subr.bf16.mxu0 %v391
    %418 = vmatpush1.bf16.msra.mxu0 %v390
    %419 = vmatprep.subr.bf16.mxu0 %v388
    %420 = vmatpush1.bf16.msra.mxu0 %v387
    %421 = vmatprep.subr.bf16.mxu0 %v385
    %422 = vmatpush1.bf16.msra.mxu0 %v384
    %423 = vmatprep.subr.bf16.mxu0 %v382
    %424 = vmatpush1.bf16.msra.mxu0 %v381
    %425 = vmatprep.subr.bf16.mxu0 %v379
    %426 = vmatpush1.bf16.msra.mxu0 %v378
    %427 = vmatprep.subr.bf16.mxu0 %v376
    %428 = vmatpush1.bf16.msra.mxu0 %v375
    %429 = vmatprep.subr.bf16.mxu0 %v373
    %430 = vmatpush1.bf16.msra.mxu0 %v372
    %431 = vmatprep.subr.bf16.mxu0 %v370
    %432 = vmatpush1.bf16.msra.mxu0 %v369
    %433 = vmatprep.subr.bf16.mxu0 0
    %434 = vmatpush2.bf16.msra.mxu0 0
    %435 = vmatprep.subr.bf16.mxu0 0
    %436 = vmatpush2.bf16.msra.mxu0 0
    %437 = vmatprep.subr.bf16.mxu0 0
    %438 = vmatpush2.bf16.msra.mxu0 0
    %439 = vmatprep.subr.bf16.mxu0 0
    %440 = vmatpush2.bf16.msra.mxu0 0
    %441 = vmatprep.subr.bf16.mxu0 0
    %442 = vmatpush2.bf16.msra.mxu0 0
    %443 = vmatprep.subr.bf16.mxu0 0
    %444 = vmatpush2.bf16.msra.mxu0 0
    %445 = vmatprep.subr.bf16.mxu0 0
    %446 = vmatpush2.bf16.msra.mxu0 0
    %447 = vmatprep.subr.bf16.mxu0 0
    %448 = vmatpush2.bf16.msra.mxu0 0
    %449 = vmatprep.mubr.bf16.mxu0 0
    %450 = vmatmul.mubr.bf16.gmra.mxu0 %v240
    %v451 = vpop.f32.mrf.mxu0
    %v452 = vadd.f32 %v277, %v451
    %v453 = vpop.f32.mrf.mxu0
    %v454 = vadd.f32 %v281, %v453
    %v455 = vpop.f32.mrf.mxu0
    %v456 = vpop.f32.mrf.mxu0
    %457 = vdwg.mxu0
    %458 = vmatprep.subr.bf16.mxu0 0
    %459 = vmatpush1.bf16.msra.mxu0 %v392
    %460 = vmatprep.subr.bf16.mxu0 0
    %461 = vmatpush1.bf16.msra.mxu0 %v389
    %462 = vmatprep.subr.bf16.mxu0 0
    %463 = vmatpush1.bf16.msra.mxu0 %v386
    %464 = vmatprep.subr.bf16.mxu0 0
    %465 = vmatpush1.bf16.msra.mxu0 %v383
    %466 = vmatprep.subr.bf16.mxu0 0
    %467 = vmatpush1.bf16.msra.mxu0 %v380
    %468 = vmatprep.subr.bf16.mxu0 0
    %469 = vmatpush1.bf16.msra.mxu0 %v377
    %470 = vmatprep.subr.bf16.mxu0 0
    %471 = vmatpush1.bf16.msra.mxu0 %v374
    %472 = vmatprep.subr.bf16.mxu0 0
    %473 = vmatpush1.bf16.msra.mxu0 %v371
    %474 = vmatprep.subr.bf16.mxu0 0
    %475 = vmatpush2.bf16.msra.mxu0 0
    %476 = vmatprep.subr.bf16.mxu0 0
    %477 = vmatpush2.bf16.msra.mxu0 0
    %478 = vmatprep.subr.bf16.mxu0 0
    %479 = vmatpush2.bf16.msra.mxu0 0
    %480 = vmatprep.subr.bf16.mxu0 0
    %481 = vmatpush2.bf16.msra.mxu0 0
    %482 = vmatprep.subr.bf16.mxu0 0
    %483 = vmatpush2.bf16.msra.mxu0 0
    %484 = vmatprep.subr.bf16.mxu0 0
    %485 = vmatpush2.bf16.msra.mxu0 0
    %486 = vmatprep.subr.bf16.mxu0 0
    %487 = vmatpush2.bf16.msra.mxu0 0
    %488 = vmatprep.subr.bf16.mxu0 0
    %489 = vmatpush2.bf16.msra.mxu0 0
    %490 = vmatprep.mubr.bf16.mxu0 0
    %491 = vmatmul.mubr.bf16.gmra.mxu0 %v240
    %v492 = vpop.f32.mrf.mxu0
    %v493 = vadd.f32 %v285, %v492
    %v494 = vpop.f32.mrf.mxu0
    %v495 = vpop.f32.mrf.mxu0
    %v496 = vpop.f32.mrf.mxu0
    %497 = vdwg.mxu0
    %v498 = vadd.f32 %v194, %v452
    %v499 = vxor.u32 %v498, 2147483648
    %v500 = vmul.f32 %v499, 1.442695
    %v501 = vpow.pop %v500
    %v502 = vadd.f32 %v501, 1.0
    %v503 = vrcp.pop %v502
    %v504 = vmul.f32 1.0, %v503
    %v505 = vadd.f32 %v196, %v454
    %v506 = vxor.u32 %v505, 2147483648
    %v507 = vmul.f32 %v506, 1.442695
    %v508 = vpow.pop %v507
    %v509 = vadd.f32 %v508, 1.0
    %v510 = vrcp.pop %v509
    %v511 = vmul.f32 1.0, %v510
    %v512 = vmul.f32 %v504, %v493
    %v513 = vadd.f32 %v235, %v512
    %v514 = vtanh.pop %v513
    %v515 = vsub.f32 1.0, %v511
    %v516 = vmul.f32 %v515, %v514
    %v517 = vmul.f32 %v511, %v92
    %v518 = vadd.f32 %v516, %v517
    %v519 = vpack.c.bf16 %v518, %v518
    %v520 = vld [vmem:[%s4] sm:$0xf]
    %v521 = vld [vmem:[%s4 + $0x4] sm:$0xf]
    %v522 = vld [vmem:[%s4 + $0x8] sm:$0xf]
    %v523 = vld [vmem:[%s4 + $0xc] sm:$0xf]
    %v524 = vld [vmem:[%s4 + $0x10] sm:$0xf]
    %v525 = vld [vmem:[%s4 + $0x14] sm:$0xf]
    %v526 = vld [vmem:[%s4 + $0x18] sm:$0xf]
    %v527 = vld [vmem:[%s4 + $0x1c] sm:$0xf]
    %v528 = vld [vmem:[%s4 + $0x20] sm:$0xf]
    %v529 = vld [vmem:[%s4 + $0x24] sm:$0xf]
    %v530 = vld [vmem:[%s4 + $0x28] sm:$0xf]
    %v531 = vld [vmem:[%s4 + $0x2c] sm:$0xf]
    %v532 = vld [vmem:[%s4 + $0x30] sm:$0xf]
    %v533 = vld [vmem:[%s4 + $0x34] sm:$0xf]
    %v534 = vld [vmem:[%s4 + $0x38] sm:$0xf]
    %v535 = vld [vmem:[%s4 + $0x3c] sm:$0xf]
    %v537 = vlaneseq
    %v538 = vshrl.u32 %v537, 7
    %v539 = vsub.s32 0, %v538
    %v540 = vrot.slane %v95, %v539
    %v558 = vunpack.c.l.b16 %v520
    %v559 = vunpack.c.l.b16 %v521
    %v560 = vunpack.c.l.b16 %v522
    %v561 = vunpack.c.l.b16 %v523
    %v562 = vunpack.c.l.b16 %v524
    %v563 = vunpack.c.l.b16 %v525
    %v564 = vunpack.c.l.b16 %v526
    %v565 = vunpack.c.l.b16 %v527
    %v566 = vunpack.c.l.b16 %v528
    %v567 = vunpack.c.l.b16 %v529
    %v568 = vunpack.c.l.b16 %v530
    %v569 = vunpack.c.l.b16 %v531
    %v570 = vunpack.c.l.b16 %v532
    %v571 = vunpack.c.l.b16 %v533
    %v572 = vunpack.c.l.b16 %v534
    %v573 = vunpack.c.l.b16 %v535
    %v574 = vpack.c.b16 %v559, %v558
    %v575 = vpack.c.b16 %v561, %v560
    %v576 = vpack.c.b16 %v563, %v562
    %v577 = vpack.c.b16 %v565, %v564
    %v578 = vpack.c.b16 %v567, %v566
    %v579 = vpack.c.b16 %v569, %v568
    %v580 = vpack.c.b16 %v571, %v570
    %v581 = vpack.c.b16 %v573, %v572
    %590 = vmatprep.subr.bf16.mxu0 0
    %591 = vmatpush1.bf16.msra.mxu0 %v581
    %592 = vmatprep.subr.bf16.mxu0 0
    %593 = vmatpush1.bf16.msra.mxu0 %v580
    %594 = vmatprep.subr.bf16.mxu0 0
    %595 = vmatpush1.bf16.msra.mxu0 %v579
    %596 = vmatprep.subr.bf16.mxu0 0
    %597 = vmatpush1.bf16.msra.mxu0 %v578
    %598 = vmatprep.subr.bf16.mxu0 0
    %599 = vmatpush1.bf16.msra.mxu0 %v577
    %600 = vmatprep.subr.bf16.mxu0 0
    %601 = vmatpush1.bf16.msra.mxu0 %v576
    %602 = vmatprep.subr.bf16.mxu0 0
    %603 = vmatpush1.bf16.msra.mxu0 %v575
    %604 = vmatprep.subr.bf16.mxu0 0
    %605 = vmatpush1.bf16.msra.mxu0 %v574
    %606 = vmatprep.subr.bf16.mxu0 0
    %607 = vmatpush2.bf16.msra.mxu0 0
    %608 = vmatprep.subr.bf16.mxu0 0
    %609 = vmatpush2.bf16.msra.mxu0 0
    %610 = vmatprep.subr.bf16.mxu0 0
    %611 = vmatpush2.bf16.msra.mxu0 0
    %612 = vmatprep.subr.bf16.mxu0 0
    %613 = vmatpush2.bf16.msra.mxu0 0
    %614 = vmatprep.subr.bf16.mxu0 0
    %615 = vmatpush2.bf16.msra.mxu0 0
    %616 = vmatprep.subr.bf16.mxu0 0
    %617 = vmatpush2.bf16.msra.mxu0 0
    %618 = vmatprep.subr.bf16.mxu0 0
    %619 = vmatpush2.bf16.msra.mxu0 0
    %620 = vmatprep.subr.bf16.mxu0 0
    %621 = vmatpush2.bf16.msra.mxu0 0
    %622 = vmatprep.mubr.bf16.mxu0 0
    %623 = vmatmul.mubr.bf16.gmra.mxu0 %v519
    %v624 = vpop.f32.mrf.mxu0
    %v625 = vadd.f32 %v540, %v624
    %v626 = vpop.f32.mrf.mxu0
    %v627 = vpop.f32.mrf.mxu0
    %v628 = vpop.f32.mrf.mxu0
    %629 = vdwg.mxu0
    %v630 = vtanh.pop %v625
    %v631 = vpack.c.bf16 %v630, %v630
    %v632 = vld [vmem:[#allocation6] sm:$0xff]
    %v633 = vld [vmem:[#allocation6 + $0x8] sm:$0xff]
    %v634 = vld [vmem:[#allocation6 + $0x10] sm:$0xff]
    %v635 = vld [vmem:[#allocation6 + $0x18] sm:$0xff]
    %v636 = vld [vmem:[#allocation6 + $0x20] sm:$0xff]
    %v637 = vld [vmem:[#allocation6 + $0x28] sm:$0xff]
    %v638 = vld [vmem:[#allocation6 + $0x30] sm:$0xff]
    %v639 = vld [vmem:[#allocation6 + $0x38] sm:$0xff]
    %v640 = vld [vmem:[#allocation6 + $0x40] sm:$0xff]
    %v641 = vld [vmem:[#allocation6 + $0x48] sm:$0xff]
    %v642 = vld [vmem:[#allocation6 + $0x50] sm:$0xff]
    %v643 = vld [vmem:[#allocation6 + $0x58] sm:$0xff]
    %v644 = vld [vmem:[#allocation6 + $0x60] sm:$0xff]
    %v645 = vld [vmem:[#allocation6 + $0x68] sm:$0xff]
    %v646 = vld [vmem:[#allocation6 + $0x70] sm:$0xff]
    %v647 = vld [vmem:[#allocation6 + $0x78] sm:$0xff]
    %v649 = vlaneseq
    %v650 = vshrl.u32 %v649, 7
    %v651 = vsub.s32 0, %v650
    %v652 = vrot.slane %v96, %v651
    %v653 = vlaneseq
    %v654 = vshrl.u32 %v653, 7
    %v655 = vsub.s32 1, %v654
    %v656 = vrot.slane %v96, %v655
    %v675 = vunpack.c.l.b16 %v632
    %v676 = vunpack.c.h.b16 %v632
    %v677 = vunpack.c.l.b16 %v633
    %v678 = vunpack.c.h.b16 %v633
    %v679 = vunpack.c.l.b16 %v634
    %v680 = vunpack.c.h.b16 %v634
    %v681 = vunpack.c.l.b16 %v635
    %v682 = vunpack.c.h.b16 %v635
    %v683 = vunpack.c.l.b16 %v636
    %v684 = vunpack.c.h.b16 %v636
    %v685 = vunpack.c.l.b16 %v637
    %v686 = vunpack.c.h.b16 %v637
    %v687 = vunpack.c.l.b16 %v638
    %v688 = vunpack.c.h.b16 %v638
    %v689 = vunpack.c.l.b16 %v639
    %v690 = vunpack.c.h.b16 %v639
    %v691 = vunpack.c.l.b16 %v640
    %v692 = vunpack.c.h.b16 %v640
    %v693 = vunpack.c.l.b16 %v641
    %v694 = vunpack.c.h.b16 %v641
    %v695 = vunpack.c.l.b16 %v642
    %v696 = vunpack.c.h.b16 %v642
    %v697 = vunpack.c.l.b16 %v643
    %v698 = vunpack.c.h.b16 %v643
    %v699 = vunpack.c.l.b16 %v644
    %v700 = vunpack.c.h.b16 %v644
    %v701 = vunpack.c.l.b16 %v645
    %v702 = vunpack.c.h.b16 %v645
    %v703 = vunpack.c.l.b16 %v646
    %v704 = vunpack.c.h.b16 %v646
    %v705 = vunpack.c.l.b16 %v647
    %v706 = vunpack.c.h.b16 %v647
    %v707 = vpack.c.b16 %v677, %v675
    %v708 = vpack.c.b16 %v678, %v676
    %v709 = vpack.c.b16 %v681, %v679
    %v710 = vpack.c.b16 %v682, %v680
    %v711 = vpack.c.b16 %v685, %v683
    %v712 = vpack.c.b16 %v686, %v684
    %v713 = vpack.c.b16 %v689, %v687
    %v714 = vpack.c.b16 %v690, %v688
    %v715 = vpack.c.b16 %v693, %v691
    %v716 = vpack.c.b16 %v694, %v692
    %v717 = vpack.c.b16 %v697, %v695
    %v718 = vpack.c.b16 %v698, %v696
    %v719 = vpack.c.b16 %v701, %v699
    %v720 = vpack.c.b16 %v702, %v700
    %v721 = vpack.c.b16 %v705, %v703
    %v722 = vpack.c.b16 %v706, %v704
    %739 = vmatprep.subr.bf16.mxu0 %v722
    %740 = vmatpush1.bf16.msra.mxu0 %v721
    %741 = vmatprep.subr.bf16.mxu0 %v720
    %742 = vmatpush1.bf16.msra.mxu0 %v719
    %743 = vmatprep.subr.bf16.mxu0 %v718
    %744 = vmatpush1.bf16.msra.mxu0 %v717
    %745 = vmatprep.subr.bf16.mxu0 %v716
    %746 = vmatpush1.bf16.msra.mxu0 %v715
    %747 = vmatprep.subr.bf16.mxu0 %v714
    %748 = vmatpush1.bf16.msra.mxu0 %v713
    %749 = vmatprep.subr.bf16.mxu0 %v712
    %750 = vmatpush1.bf16.msra.mxu0 %v711
    %751 = vmatprep.subr.bf16.mxu0 %v710
    %752 = vmatpush1.bf16.msra.mxu0 %v709
    %753 = vmatprep.subr.bf16.mxu0 %v708
    %754 = vmatpush1.bf16.msra.mxu0 %v707
    %755 = vmatprep.subr.bf16.mxu0 0
    %756 = vmatpush2.bf16.msra.mxu0 0
    %757 = vmatprep.subr.bf16.mxu0 0
    %758 = vmatpush2.bf16.msra.mxu0 0
    %759 = vmatprep.subr.bf16.mxu0 0
    %760 = vmatpush2.bf16.msra.mxu0 0
    %761 = vmatprep.subr.bf16.mxu0 0
    %762 = vmatpush2.bf16.msra.mxu0 0
    %763 = vmatprep.subr.bf16.mxu0 0
    %764 = vmatpush2.bf16.msra.mxu0 0
    %765 = vmatprep.subr.bf16.mxu0 0
    %766 = vmatpush2.bf16.msra.mxu0 0
    %767 = vmatprep.subr.bf16.mxu0 0
    %768 = vmatpush2.bf16.msra.mxu0 0
    %769 = vmatprep.subr.bf16.mxu0 0
    %770 = vmatpush2.bf16.msra.mxu0 0
    %771 = vmatprep.mubr.bf16.mxu0 0
    %772 = vmatmul.mubr.bf16.gmra.mxu0 %v631
    %v773 = vpop.f32.mrf.mxu0
    %v774 = vadd.f32 %v652, %v773
    %v775 = vpop.f32.mrf.mxu0
    %v776 = vadd.f32 %v656, %v775
    %v777 = vpop.f32.mrf.mxu0
    %v778 = vpop.f32.mrf.mxu0
    %779 = vdwg.mxu0
    %v780 = vtanh.pop %v774
    %v781 = vpack.c.bf16 %v780, %v780
    %v782 = vld [vmem:[#allocation7] sm:$0xf]
    %v783 = vld [vmem:[#allocation7 + $0x4] sm:$0xf]
    %v784 = vld [vmem:[#allocation7 + $0x8] sm:$0xf]
    %v785 = vld [vmem:[#allocation7 + $0xc] sm:$0xf]
    %v786 = vld [vmem:[#allocation7 + $0x10] sm:$0xf]
    %v787 = vld [vmem:[#allocation7 + $0x14] sm:$0xf]
    %v788 = vld [vmem:[#allocation7 + $0x18] sm:$0xf]
    %v789 = vld [vmem:[#allocation7 + $0x1c] sm:$0xf]
    %v790 = vld [vmem:[#allocation7 + $0x20] sm:$0xf]
    %v791 = vld [vmem:[#allocation7 + $0x24] sm:$0xf]
    %v792 = vld [vmem:[#allocation7 + $0x28] sm:$0xf]
    %v793 = vld [vmem:[#allocation7 + $0x2c] sm:$0xf]
    %v794 = vld [vmem:[#allocation7 + $0x30] sm:$0xf]
    %v795 = vld [vmem:[#allocation7 + $0x34] sm:$0xf]
    %v796 = vld [vmem:[#allocation7 + $0x38] sm:$0xf]
    %v797 = vld [vmem:[#allocation7 + $0x3c] sm:$0xf]
    %v799 = vlaneseq
    %v800 = vshrl.u32 %v799, 7
    %v801 = vsub.s32 0, %v800
    %v802 = vrot.slane %v97, %v801
    %v820 = vunpack.c.l.b16 %v782
    %v821 = vunpack.c.l.b16 %v783
    %v822 = vunpack.c.l.b16 %v784
    %v823 = vunpack.c.l.b16 %v785
    %v824 = vunpack.c.l.b16 %v786
    %v825 = vunpack.c.l.b16 %v787
    %v826 = vunpack.c.l.b16 %v788
    %v827 = vunpack.c.l.b16 %v789
    %v828 = vunpack.c.l.b16 %v790
    %v829 = vunpack.c.l.b16 %v791
    %v830 = vunpack.c.l.b16 %v792
    %v831 = vunpack.c.l.b16 %v793
    %v832 = vunpack.c.l.b16 %v794
    %v833 = vunpack.c.l.b16 %v795
    %v834 = vunpack.c.l.b16 %v796
    %v835 = vunpack.c.l.b16 %v797
    %v836 = vpack.c.b16 %v821, %v820
    %v837 = vpack.c.b16 %v823, %v822
    %v838 = vpack.c.b16 %v825, %v824
    %v839 = vpack.c.b16 %v827, %v826
    %v840 = vpack.c.b16 %v829, %v828
    %v841 = vpack.c.b16 %v831, %v830
    %v842 = vpack.c.b16 %v833, %v832
    %v843 = vpack.c.b16 %v835, %v834
    %852 = vmatprep.subr.bf16.mxu0 0
    %853 = vmatpush1.bf16.msra.mxu0 %v843
    %854 = vmatprep.subr.bf16.mxu0 0
    %855 = vmatpush1.bf16.msra.mxu0 %v842
    %856 = vmatprep.subr.bf16.mxu0 0
    %857 = vmatpush1.bf16.msra.mxu0 %v841
    %858 = vmatprep.subr.bf16.mxu0 0
    %859 = vmatpush1.bf16.msra.mxu0 %v840
    %860 = vmatprep.subr.bf16.mxu0 0
    %861 = vmatpush1.bf16.msra.mxu0 %v839
    %862 = vmatprep.subr.bf16.mxu0 0
    %863 = vmatpush1.bf16.msra.mxu0 %v838
    %864 = vmatprep.subr.bf16.mxu0 0
    %865 = vmatpush1.bf16.msra.mxu0 %v837
    %866 = vmatprep.subr.bf16.mxu0 0
    %867 = vmatpush1.bf16.msra.mxu0 %v836
    %868 = vmatprep.subr.bf16.mxu0 0
    %869 = vmatpush2.bf16.msra.mxu0 0
    %870 = vmatprep.subr.bf16.mxu0 0
    %871 = vmatpush2.bf16.msra.mxu0 0
    %872 = vmatprep.subr.bf16.mxu0 0
    %873 = vmatpush2.bf16.msra.mxu0 0
    %874 = vmatprep.subr.bf16.mxu0 0
    %875 = vmatpush2.bf16.msra.mxu0 0
    %876 = vmatprep.subr.bf16.mxu0 0
    %877 = vmatpush2.bf16.msra.mxu0 0
    %878 = vmatprep.subr.bf16.mxu0 0
    %879 = vmatpush2.bf16.msra.mxu0 0
    %880 = vmatprep.subr.bf16.mxu0 0
    %881 = vmatpush2.bf16.msra.mxu0 0
    %882 = vmatprep.subr.bf16.mxu0 0
    %883 = vmatpush2.bf16.msra.mxu0 0
    %884 = vmatprep.mubr.bf16.mxu0 0
    %885 = vmatmul.mubr.bf16.gmra.mxu0 %v781
    %v886 = vpop.f32.mrf.mxu0
    %v887 = vadd.f32 %v802, %v886
    %v888 = vpop.f32.mrf.mxu0
    %v889 = vpop.f32.mrf.mxu0
    %v890 = vpop.f32.mrf.mxu0
    %891 = vdwg.mxu0
    %892 = vmax.xlane.f32.xlu0 %v887
    %v893 = vpop.xlane.xlu0 %892
    %v894 = vsub.f32 %v887, %v893
    %v895 = vmul.f32 %v894, 1.442695
    %v896 = vpow.pop %v895
    %897 = vadd.xlane.f32.xlu0 %v896
    %v898 = vpop.xlane.xlu0 %897
    %v899 = vlog2.pop %v898
    %v900 = vmul.f32 %v899, 0.6931472
    %v901 = vsub.f32 %v894, %v900
    %v902 = vmul.f32 %v901, 1.442695
    %v903 = vpow.pop %v902
    %v904 = vlaneseq
    %v905 = vand.u32 %v904, 127
    %vm906 = vcmp.eq.f32.partialorder %v887, %v893
    %v907 = vsel %vm906, %v905, 128
    %v908 = vand.u32 %v907, 65535
    %v909 = vshra.s32 %v907, 16
    %v910 = vcvt.s32.f32 %v908
    %v911 = vcvt.s32.f32 %v909
    %912 = vmin.xlane.f32.xlu0 %v911
    %v913 = vpop.xlane.xlu0 %912
    %vm914 = vcmp.eq.f32.partialorder %v911, %v913
    %v915 = vsel %vm914, %v910, inf
    %916 = vmin.xlane.f32.xlu0 %v915
    %v917 = vpop.xlane.xlu0 %916
    %v918 = vcvt.f32.s32 %v917
    %v919 = vcvt.f32.s32 %v913
    %v920 = vshll.u32 %v919, 16
    %v921 = vadd.s32 %v920, %v918
    %vm922 = vcmp.eq.s32.totalorder %v905, %v921
    %v923 = vsel %vm922, %v901, 0.0
    %924 = vadd.xlane.f32.xlu0 %v923
    %v925 = vpop.xlane.xlu0 %924
    %v926 = vmul.f32 %v903, %v901
    %927 = vadd.xlane.f32.xlu0 %v926
    %v928 = vpop.xlane.xlu0 %927
    %v929 = vsub.f32 0.0, %v928
    %v930 = vcvt.s32.f32 %v921
    %vm931 = vcmp.eq.s32.totalorder %v905, 124
    %vm932 = vcmp.eq.s32.totalorder %v905, 125
    %vm933 = vcmp.eq.s32.totalorder %v905, 126
    %v934 = vsel %vm933, %v929, %v930
    %v935 = vsel %vm932, %v925, %v934
    %937 = vset.pattern.permute.xlu0 0
    %938 = vperm.xlu0 %937, %v776
    %v939 = vpop.permute.xlu0 %938
    %v941 = vsel %vm931, %v939, %v935
    %vm942 = vcmp.lt.s32.totalorder %v905, 124
    %v943 = vsel %vm942, %v518, %v941
    %944 = vst [vmem:[%s8] sm:$0xff] %v943
    // Predicated region
    $region50: #{_policy_act_impl.1} parent=1 // pred_check
      _
    $region51: #{_policy_act_impl.1} parent=1 // pred_check_branch
      %946 = sbr.rel (0) target = $region53
    $region52: #{_policy_act_impl.1} parent=1 // pred_region
      _
    $region53: #{_policy_act_impl.1} parent=1 // pred_fallthru
      _
    // Predicated region
    $region54: #{_policy_act_impl.1} parent=1 // pred_check
      _
    $region55: #{_policy_act_impl.1} parent=1 // pred_check_branch
      %948 = sbr.rel (0) target = $region57
    $region56: #{_policy_act_impl.1} parent=1 // pred_region
      _
    $region57: #{_policy_act_impl.1} parent=1 // pred_fallthru
      _
    %949 = vsyncpa [#allocation3], 1
    %950 = vsyncpa [#allocation5], 1
    %951 = vsyncpa [#allocation8], 1

</llo_original>
